<compile_context>
chip_gen: v5e
topology: v5e:2x2
jax: 0.10.0
libtpu: 0.0.40
codegen_flags: <defaults>
</compile_context>

<pallas_src>
import functools

import jax
import jax.numpy as jnp
from jax.experimental import pallas as pl
from jax.experimental.pallas import tpu as pltpu

num_hiddens = 64
num_residual_hiddens = 32


def residual_kernel(x_ref, wc_ref, wp_ref, wn_ref, w2_ref, o_ref, *, rows_per_seq):
    # x_ref/o_ref: (M, 2*C) f32 packed rows; row r holds positions (2t, 2t+1).
    # wc/wp/wn:    (2*C, 2*Cres_pad) bf16 packed k=3 conv taps.
    # w2:          (2*Cres_pad, 2*C) bf16 block-diagonal 1x1 conv.
    x = x_ref[...]
    m = x.shape[0]
    h = jnp.maximum(x, 0.0)                               # ReLU (f32)

    # Neighbouring packed rows via XLU sublane rotation.  Blocks hold whole
    # sequences, so the wrapped rows are exactly the sequence-boundary rows
    # zeroed below.
    h_prev = pltpu.roll(h, 1, axis=0)                     # row r <- h[r-1]
    h_next = pltpu.roll(h, m - 1, axis=0)                 # row r <- h[r+1]

    pos = jax.lax.broadcasted_iota(jnp.int32, (m, 1), 0) % rows_per_seq
    h_prev = jnp.where(pos == 0, 0.0, h_prev)             # zero pad at seq start
    h_next = jnp.where(pos == rows_per_seq - 1, 0.0, h_next)  # zero pad at seq end

    # k=3 conv: three full-vreg K=2C MXU passes, f32 accumulation.
    y = jnp.dot(h.astype(jnp.bfloat16), wc_ref[...],
                preferred_element_type=jnp.float32)
    y = y + jnp.dot(h_prev.astype(jnp.bfloat16), wp_ref[...],
                    preferred_element_type=jnp.float32)
    y = y + jnp.dot(h_next.astype(jnp.bfloat16), wn_ref[...],
                    preferred_element_type=jnp.float32)
    y = jnp.maximum(y, 0.0).astype(jnp.bfloat16)          # ReLU in f32, cast for MXU

    # 1x1 conv (block-diagonal over the two packed positions) + residual add.
    z = jnp.dot(y, w2_ref[...], preferred_element_type=jnp.float32)
    o_ref[...] = x_ref[...] + z   # re-read x_ref to keep the f32 input live range short


def _pick_block_rows(total_rows, rows_per_seq, target_rows=2048, min_grid=2):
    """Pick the packed-row block size.

    Constraints: the block covers a whole number of sequences (so the in-kernel
    roll/masks are exact), divides total_rows, and its row count is a multiple
    of 8 (or the full array) per the (8,128) rule.  Preference: largest block
    <= target_rows that still leaves >= min_grid grid steps (both v7x
    TensorCores busy), else largest block <= target_rows, else smallest legal.
    """
    n_seqs = total_rows // rows_per_seq
    candidates = []
    for n in range(1, n_seqs + 1):
        if n_seqs % n:
            continue
        mb = n * rows_per_seq
        if mb % 8 == 0 or mb == total_rows:
            candidates.append(mb)
    split = [mb for mb in candidates
             if mb <= target_rows and total_rows // mb >= min_grid]
    if split:
        return max(split)
    small = [mb for mb in candidates if mb <= target_rows]
    if small:
        return max(small)
    return min(candidates)


@jax.jit
def residual_forward(x_ncl, w1, w2):
    """x_ncl: (N, Cin, L) f32 (PyTorch layout)
       w1:    (Cres, Cin, 3) f32  -- Conv1d(k=3, pad=1, bias=False) weight
       w2:    (Cout, Cres, 1) f32 -- Conv1d(k=1, bias=False) weight
       returns (N, Cout, L) f32"""
    N, Cin, L = x_ncl.shape
    Cres = w1.shape[0]
    Cout = w2.shape[0]
    assert w1.shape == (Cres, Cin, 3) and w2.shape == (Cout, Cres, 1)
    assert Cout == Cin, "residual add requires in_channels == num_hiddens"
    if L % 2:
        raise NotImplementedError("even sequence length required for 2-wide packing")

    rows_per_seq = L // 2
    total_rows = N * rows_per_seq

    # ---- one-off weight re-packing (wrapper side, tiny) --------------------
    cres_pad = -(-Cres // 64) * 64                 # per-position hidden width
    w_m1 = jnp.transpose(w1[:, :, 0])              # (Cin, Cres): applied to h[l-1]
    w_0 = jnp.transpose(w1[:, :, 1])               #               applied to h[l]
    w_p1 = jnp.transpose(w1[:, :, 2])              #               applied to h[l+1]
    w2m = jnp.transpose(w2[:, :, 0])               # (Cres, Cout)

    def padc(w):                                   # pad hidden dim to cres_pad
        return jnp.pad(w, ((0, 0), (0, cres_pad - Cres)))

    zc = jnp.zeros((Cin, cres_pad), jnp.float32)
    # Packed-row tap matrices (2*Cin, 2*cres_pad); lanes = [pos 2t | pos 2t+1].
    w_center = jnp.block([[padc(w_0), padc(w_m1)],
                          [padc(w_p1), padc(w_0)]])
    w_prev = jnp.block([[zc, zc],
                        [padc(w_m1), zc]])
    w_next = jnp.block([[zc, padc(w_p1)],
                        [zc, zc]])
    # Block-diagonal 1x1 conv (2*cres_pad, 2*Cout).
    w2p = jnp.pad(w2m, ((0, cres_pad - Cres), (0, 0)))
    zo = jnp.zeros((cres_pad, Cout), jnp.float32)
    w2_blk = jnp.block([[w2p, zo],
                        [zo, w2p]])
    w_center = w_center.astype(jnp.bfloat16)
    w_prev = w_prev.astype(jnp.bfloat16)
    w_next = w_next.astype(jnp.bfloat16)
    w2_blk = w2_blk.astype(jnp.bfloat16)

    # ---- lane-dense activation packing: (N, Cin, L) -> (N*L/2, 2*Cin) -------
    # (transpose + reshape fuse into a single XLA copy under jit)
    x_packed = jnp.transpose(x_ncl, (0, 2, 1)).reshape(total_rows, 2 * Cin)

    m_block = _pick_block_rows(total_rows, rows_per_seq)
    grid = (total_rows // m_block,)

    out_packed = pl.pallas_call(
        functools.partial(residual_kernel, rows_per_seq=rows_per_seq),
        out_shape=jax.ShapeDtypeStruct((total_rows, 2 * Cout), jnp.float32),
        grid_spec=pltpu.PrefetchScalarGridSpec(
            num_scalar_prefetch=0,
            grid=grid,
            in_specs=[
                pl.BlockSpec((m_block, 2 * Cin), lambda i: (i, 0)),
                pl.BlockSpec(w_center.shape, lambda i: (0, 0)),
                pl.BlockSpec(w_prev.shape, lambda i: (0, 0)),
                pl.BlockSpec(w_next.shape, lambda i: (0, 0)),
                pl.BlockSpec(w2_blk.shape, lambda i: (0, 0)),
            ],
            out_specs=pl.BlockSpec((m_block, 2 * Cout), lambda i: (i, 0)),
        ),
        compiler_params=pltpu.CompilerParams(
            dimension_semantics=("parallel",),
            vmem_limit_bytes=32 * 1024 * 1024),
    )(x_packed, w_center, w_prev, w_next, w2_blk)

    # Unpack: (N*L/2, 2*Cout) -> (N, L, Cout) -> (N, Cout, L).
    return jnp.transpose(out_packed.reshape(N, L, Cout), (0, 2, 1))


def residual_ref(x_ncl, w1, w2):
    """Pure-JAX f32 reference with PyTorch Conv1d semantics (NCL layout)."""
    h = jnp.maximum(x_ncl, 0.0)                         # (N, C, L)
    hp = jnp.pad(h, ((0, 0), (0, 0), (1, 1)))
    y = (jnp.einsum("ncl,oc->nol", hp[:, :, :-2], w1[:, :, 0])
         + jnp.einsum("ncl,oc->nol", hp[:, :, 1:-1], w1[:, :, 1])
         + jnp.einsum("ncl,oc->nol", hp[:, :, 2:], w1[:, :, 2]))
    y = jnp.maximum(y, 0.0)
    z = jnp.einsum("nrl,or->nol", y, w2[:, :, 0])
    return x_ncl + z


if __name__ == "__main__":
    in_channels = num_hiddens        # 64; residual add requires Cin == num_hiddens
    L = 16
    N = 2

    key = jax.random.PRNGKey(0)
    kx, k1, k2 = jax.random.split(key, 3)

    # PyTorch-layout input and conv weights.
    x_ncl = jax.random.normal(kx, (N, in_channels, L), dtype=jnp.float32)
    w1 = jax.random.normal(
        k1, (num_residual_hiddens, in_channels, 3), dtype=jnp.float32) * 0.05
    w2 = jax.random.normal(
        k2, (num_hiddens, num_residual_hiddens, 1), dtype=jnp.float32) * 0.05

    out = jax.block_until_ready(residual_forward(x_ncl, w1, w2))
    ref = residual_ref(x_ncl, w1, w2)

    assert out.shape == (N, num_hiddens, L)
    max_err = float(jnp.max(jnp.abs(out - ref)))
    assert jnp.allclose(out, ref, atol=2e-2, rtol=2e-2), max_err

    print("KERNEL_OK")
</pallas_src>

<mosaic_0001>
module attributes {stable_mosaic.version = 11 : i64} {
  func.func @residual_kernel(%arg0: i32, %arg1: memref<8x128xf32, #tpu.memory_space<vmem>>, %arg2: memref<128x128xbf16, #tpu.memory_space<vmem>>, %arg3: memref<128x128xbf16, #tpu.memory_space<vmem>>, %arg4: memref<128x128xbf16, #tpu.memory_space<vmem>>, %arg5: memref<128x128xbf16, #tpu.memory_space<vmem>>, %arg6: memref<8x128xf32, #tpu.memory_space<vmem>>) attributes {dimension_semantics = [#tpu.dimension_semantics<parallel>], iteration_bounds = array<i64: 2>, scalar_prefetch = 0 : i64, scratch_operands = 0 : i64, tpu.core_type = #tpu.core_type<tc>, window_params = [{transform_indices = @transform_0, window_bounds = array<i64: 8, 128>}, {pipeline_mode = #tpu.pipeline_mode<synchronous>, transform_indices = @transform_1, window_bounds = array<i64: 128, 128>}, {pipeline_mode = #tpu.pipeline_mode<synchronous>, transform_indices = @transform_2, window_bounds = array<i64: 128, 128>}, {pipeline_mode = #tpu.pipeline_mode<synchronous>, transform_indices = @transform_3, window_bounds = array<i64: 128, 128>}, {pipeline_mode = #tpu.pipeline_mode<synchronous>, transform_indices = @transform_4, window_bounds = array<i64: 128, 128>}, {transform_indices = @transform_5, window_bounds = array<i64: 8, 128>}]} {
    %c0 = arith.constant 0 : index
    %c0_0 = arith.constant 0 : index
    %0 = vector.load %arg1[%c0, %c0_0] : memref<8x128xf32, #tpu.memory_space<vmem>>, vector<8x128xf32>
    %cst = arith.constant 0.000000e+00 : f32
    %1 = vector.broadcast %cst : f32 to vector<8x128xf32>
    %2 = arith.maximumf %0, %1 : vector<8x128xf32>
    %c1_i32 = arith.constant 1 : i32
    %3 = tpu.dynamic_rotate %2 by %c1_i32 dim 0 : vector<8x128xf32>, i32 -> vector<8x128xf32>
    %c7_i32 = arith.constant 7 : i32
    %4 = tpu.dynamic_rotate %2 by %c7_i32 dim 0 : vector<8x128xf32>, i32 -> vector<8x128xf32>
    %5 = tpu.iota {dimensions = array<i32: 0>} : vector<8x1xi32>
    %c8_i32 = arith.constant 8 : i32
    %c0_i32 = arith.constant 0 : i32
    %6 = arith.cmpi eq, %c8_i32, %c0_i32 : i32
    %c1_i32_1 = arith.constant 1 : i32
    %7 = arith.select %6, %c1_i32_1, %c8_i32 : i32
    %8 = vector.broadcast %7 : i32 to vector<8x1xi32>
    %9 = arith.remsi %5, %8 : vector<8x1xi32>
    %c0_i32_2 = arith.constant 0 : i32
    %10 = vector.broadcast %c0_i32_2 : i32 to vector<8x1xi32>
    %11 = arith.cmpi ne, %9, %10 : vector<8x1xi32>
    %c0_i32_3 = arith.constant 0 : i32
    %12 = vector.broadcast %c0_i32_3 : i32 to vector<8x1xi32>
    %13 = arith.cmpi slt, %9, %12 : vector<8x1xi32>
    %c0_i32_4 = arith.constant 0 : i32
    %14 = arith.cmpi slt, %7, %c0_i32_4 : i32
    %15 = vector.broadcast %14 : i1 to vector<8x1xi1>
    %16 = vector.broadcast %15 : vector<8x1xi1> to vector<8x1xi1>
    %17 = arith.xori %13, %16 : vector<8x1xi1>
    %18 = arith.andi %17, %11 : vector<8x1xi1>
    %19 = vector.broadcast %7 : i32 to vector<8x1xi32>
    %20 = arith.addi %9, %19 : vector<8x1xi32>
    %21 = arith.select %18, %20, %9 : vector<8x1xi1>, vector<8x1xi32>
    %c0_i32_5 = arith.constant 0 : i32
    %22 = vector.broadcast %c0_i32_5 : i32 to vector<8x1xi32>
    %23 = arith.cmpi eq, %21, %22 : vector<8x1xi32>
    %cst_6 = arith.constant 0.000000e+00 : f32
    %24 = vector.shape_cast %23 : vector<8x1xi1> to vector<8x1xi1>
    %25 = vector.broadcast %24 : vector<8x1xi1> to vector<8x128xi1>
    %26 = vector.broadcast %cst_6 : f32 to vector<8x128xf32>
    %27 = arith.select %25, %26, %3 : vector<8x128xi1>, vector<8x128xf32>
    %c7_i32_7 = arith.constant 7 : i32
    %28 = vector.broadcast %c7_i32_7 : i32 to vector<8x1xi32>
    %29 = arith.cmpi eq, %21, %28 : vector<8x1xi32>
    %cst_8 = arith.constant 0.000000e+00 : f32
    %30 = vector.shape_cast %29 : vector<8x1xi1> to vector<8x1xi1>
    %31 = vector.broadcast %30 : vector<8x1xi1> to vector<8x128xi1>
    %32 = vector.broadcast %cst_8 : f32 to vector<8x128xf32>
    %33 = arith.select %31, %32, %4 : vector<8x128xi1>, vector<8x128xf32>
    %34 = arith.truncf %2 : vector<8x128xf32> to vector<8x128xbf16>
    %c0_9 = arith.constant 0 : index
    %c0_10 = arith.constant 0 : index
    %35 = vector.load %arg2[%c0_9, %c0_10] : memref<128x128xbf16, #tpu.memory_space<vmem>>, vector<128x128xbf16>
    %cst_11 = arith.constant dense<0.000000e+00> : vector<8x128xf32>
    %36 = tpu.matmul %34, %35, %cst_11 {dimension_numbers = #tpu.dot_dimension_numbers<[1], [0], [0], [1], [0, 0, 1, 1], [], []>} : vector<8x128xbf16>, vector<128x128xbf16>, vector<8x128xf32> -> vector<8x128xf32>
    %37 = arith.truncf %27 : vector<8x128xf32> to vector<8x128xbf16>
    %c0_12 = arith.constant 0 : index
    %c0_13 = arith.constant 0 : index
    %38 = vector.load %arg3[%c0_12, %c0_13] : memref<128x128xbf16, #tpu.memory_space<vmem>>, vector<128x128xbf16>
    %cst_14 = arith.constant dense<0.000000e+00> : vector<8x128xf32>
    %39 = tpu.matmul %37, %38, %cst_14 {dimension_numbers = #tpu.dot_dimension_numbers<[1], [0], [0], [1], [0, 0, 1, 1], [], []>} : vector<8x128xbf16>, vector<128x128xbf16>, vector<8x128xf32> -> vector<8x128xf32>
    %40 = arith.addf %36, %39 : vector<8x128xf32>
    %41 = arith.truncf %33 : vector<8x128xf32> to vector<8x128xbf16>
    %c0_15 = arith.constant 0 : index
    %c0_16 = arith.constant 0 : index
    %42 = vector.load %arg4[%c0_15, %c0_16] : memref<128x128xbf16, #tpu.memory_space<vmem>>, vector<128x128xbf16>
    %cst_17 = arith.constant dense<0.000000e+00> : vector<8x128xf32>
    %43 = tpu.matmul %41, %42, %cst_17 {dimension_numbers = #tpu.dot_dimension_numbers<[1], [0], [0], [1], [0, 0, 1, 1], [], []>} : vector<8x128xbf16>, vector<128x128xbf16>, vector<8x128xf32> -> vector<8x128xf32>
    %44 = arith.addf %40, %43 : vector<8x128xf32>
    %cst_18 = arith.constant 0.000000e+00 : f32
    %45 = vector.broadcast %cst_18 : f32 to vector<8x128xf32>
    %46 = arith.maximumf %44, %45 : vector<8x128xf32>
    %47 = arith.truncf %46 : vector<8x128xf32> to vector<8x128xbf16>
    %c0_19 = arith.constant 0 : index
    %c0_20 = arith.constant 0 : index
    %48 = vector.load %arg5[%c0_19, %c0_20] : memref<128x128xbf16, #tpu.memory_space<vmem>>, vector<128x128xbf16>
    %cst_21 = arith.constant dense<0.000000e+00> : vector<8x128xf32>
    %49 = tpu.matmul %47, %48, %cst_21 {dimension_numbers = #tpu.dot_dimension_numbers<[1], [0], [0], [1], [0, 0, 1, 1], [], []>} : vector<8x128xbf16>, vector<128x128xbf16>, vector<8x128xf32> -> vector<8x128xf32>
    %c0_22 = arith.constant 0 : index
    %c0_23 = arith.constant 0 : index
    %50 = vector.load %arg1[%c0_22, %c0_23] : memref<8x128xf32, #tpu.memory_space<vmem>>, vector<8x128xf32>
    %51 = arith.addf %50, %49 : vector<8x128xf32>
    %c0_24 = arith.constant 0 : index
    %c0_25 = arith.constant 0 : index
    %52 = vector.load %arg6[%c0_24, %c0_25] : memref<8x128xf32, #tpu.memory_space<vmem>>, vector<8x128xf32>
    tpu.vector_store %arg6[%c0_24, %c0_25], %51 {strides = array<i32>} : memref<8x128xf32, #tpu.memory_space<vmem>>, vector<8x128xf32>,
    return
  }
  func.func @transform_0(%arg0: i32) -> (i32, i32) {
    %c0_i32 = arith.constant 0 : i32
    %c0_i32_0 = arith.constant 0 : i32
    return %arg0, %c0_i32 : i32, i32
  }
  func.func @transform_1(%arg0: i32) -> (i32, i32) {
    %c0_i32 = arith.constant 0 : i32
    %c0_i32_0 = arith.constant 0 : i32
    %c0_i32_1 = arith.constant 0 : i32
    return %c0_i32, %c0_i32_0 : i32, i32
  }
  func.func @transform_2(%arg0: i32) -> (i32, i32) {
    %c0_i32 = arith.constant 0 : i32
    %c0_i32_0 = arith.constant 0 : i32
    %c0_i32_1 = arith.constant 0 : i32
    return %c0_i32, %c0_i32_0 : i32, i32
  }
  func.func @transform_3(%arg0: i32) -> (i32, i32) {
    %c0_i32 = arith.constant 0 : i32
    %c0_i32_0 = arith.constant 0 : i32
    %c0_i32_1 = arith.constant 0 : i32
    return %c0_i32, %c0_i32_0 : i32, i32
  }
  func.func @transform_4(%arg0: i32) -> (i32, i32) {
    %c0_i32 = arith.constant 0 : i32
    %c0_i32_0 = arith.constant 0 : i32
    %c0_i32_1 = arith.constant 0 : i32
    return %c0_i32, %c0_i32_0 : i32, i32
  }
  func.func @transform_5(%arg0: i32) -> (i32, i32) {
    %c0_i32 = arith.constant 0 : i32
    %c0_i32_0 = arith.constant 0 : i32
    return %arg0, %c0_i32 : i32, i32
  }
}

</mosaic_0001>

<llo_original>
// kernel: residual_forward.1
$region0: #{residual_forward.1}
  #allocation0 [shape = 'u32[]', space=smem, size = 0x4, offset = 0x4, fixed_abs, tag = 'smem constant byte address 0x4 - core index']
  #allocation1 [shape = 'u32[72,128]{1,0:T(1,128)}', space=vmem, size = 0x9000, scoped, tag = 'internal scratch']
  %s0 = inlined_call_operand.vmem [shape: f32[16,128], index: 0, kind: input, shape index: {}]
  %s1 = inlined_call_operand.vmem [shape: bf16[128,128], index: 1, kind: input, shape index: {}]
  %s2 = inlined_call_operand.vmem [shape: bf16[128,128], index: 2, kind: input, shape index: {}]
  %s3 = inlined_call_operand.vmem [shape: bf16[128,128], index: 3, kind: input, shape index: {}]
  %s4 = inlined_call_operand.vmem [shape: bf16[128,128], index: 4, kind: input, shape index: {}]
  %s5 = inlined_call_operand.vmem [shape: f32[16,128], index: 5, kind: output, shape index: {}]
  %s6 = sld [smem:[#allocation0]]
  $region53: #{residual_forward.1} parent=0
    _
  %s8 = ssub.s32 1, %s6
  %s9 = scalar_select 0, %s8, %s6
  loop: start=0, step=1, limit=4
  $region2: #{residual_forward.1} parent=0 // loop_pre_header
    _
  $region3: #{residual_forward.1} parent=0 // loop_header
    %s11 = sphi 0, %s15
    %p12 = scmp.ge.s32.totalorder %s11, 4
    %s21 = sphi 0, %s23
    %s24 = sphi 0, %s21
    %s25 = sphi 0, %s24
    %s41 = sphi 0, %s25
    %s45 = sphi 0, %s45
    %s47 = sphi 0, %s45
    %s48 = sphi 0, %s47
    %s62 = sphi 0, %s48
    %s66 = sphi 0, %s66
    %s68 = sphi 0, %s66
    %s69 = sphi 0, %s68
    %s83 = sphi 0, %s69
    %s87 = sphi 0, %s87
    %s89 = sphi 0, %s87
    %s90 = sphi 0, %s89
    %s104 = sphi 0, %s90
    %s108 = sphi 0, %s108
    %s110 = sphi 0, %s108
    %s111 = sphi 0, %s110
    %s125 = sphi 0, %s111
    %s131 = sphi 0, %s133
    %s134 = sphi 0, %s131
    %s135 = sphi 0, %s134
    %s151 = sphi 0, %s135
  $region4: #{residual_forward.1} parent=0 // loop_header_branch
    %14 = sbr.rel (%p12) target = $region8
  $region5: #{residual_forward.1} parent=0 // loop_body
    %s16 = ssub.s32 %s11, 1
    %s17 = ssub.s32 %s11, 2
    %s18 = sadd.s32 %s11, 1
    %s19 = ssub.s32 %s11, %s18
    %p20 = scmp.eq.s32.totalorder %s19, 0
    %s22 = sadd.s32 %s21, 1
    %s23 = scalar_select %p20, %s21, %s22
    %p26 = pneg %p20
    %p27 = scmp.eq.s32.totalorder %s11, 1
    %p28 = por %p26, %p27
    %p29 = scmp.ne.s32.totalorder %s21, %s24
    %p30 = scmp.eq.s32.totalorder %s11, 0
    %p31 = por %p29, %p30
    %p32 = scmp.ne.s32.totalorder %s21, %s24
    %p33 = scmp.eq.s32.totalorder %s16, 1
    %p34 = por %p32, %p33
    %p35 = scmp.ne.s32.totalorder %s24, %s25
    %p36 = scmp.eq.s32.totalorder %s16, 0
    %p37 = por %p35, %p36
    %p38 = scmp.ne.s32.totalorder %s24, %s25
    %p39 = scmp.eq.s32.totalorder %s17, 1
    %p40 = por %p38, %p39
    %p42 = scmp.ne.s32.totalorder %s25, %s41
    %p43 = scmp.eq.s32.totalorder %s17, 0
    %p44 = por %p42, %p43
    %s46 = sadd.s32 %s45, 1
    %p49 = scmp.eq.s32.totalorder %s11, 1
    %p50 = scmp.ne.s32.totalorder %s45, %s47
    %p51 = scmp.eq.s32.totalorder %s11, 0
    %p52 = por %p50, %p51
    %p53 = scmp.ne.s32.totalorder %s45, %s47
    %p54 = scmp.eq.s32.totalorder %s16, 1
    %p55 = por %p53, %p54
    %p56 = scmp.ne.s32.totalorder %s47, %s48
    %p57 = scmp.eq.s32.totalorder %s16, 0
    %p58 = por %p56, %p57
    %p59 = scmp.ne.s32.totalorder %s47, %s48
    %p60 = scmp.eq.s32.totalorder %s17, 1
    %p61 = por %p59, %p60
    %p63 = scmp.ne.s32.totalorder %s48, %s62
    %p64 = scmp.eq.s32.totalorder %s17, 0
    %p65 = por %p63, %p64
    %s67 = sadd.s32 %s66, 1
    %p70 = scmp.eq.s32.totalorder %s11, 1
    %p71 = scmp.ne.s32.totalorder %s66, %s68
    %p72 = scmp.eq.s32.totalorder %s11, 0
    %p73 = por %p71, %p72
    %p74 = scmp.ne.s32.totalorder %s66, %s68
    %p75 = scmp.eq.s32.totalorder %s16, 1
    %p76 = por %p74, %p75
    %p77 = scmp.ne.s32.totalorder %s68, %s69
    %p78 = scmp.eq.s32.totalorder %s16, 0
    %p79 = por %p77, %p78
    %p80 = scmp.ne.s32.totalorder %s68, %s69
    %p81 = scmp.eq.s32.totalorder %s17, 1
    %p82 = por %p80, %p81
    %p84 = scmp.ne.s32.totalorder %s69, %s83
    %p85 = scmp.eq.s32.totalorder %s17, 0
    %p86 = por %p84, %p85
    %s88 = sadd.s32 %s87, 1
    %p91 = scmp.eq.s32.totalorder %s11, 1
    %p92 = scmp.ne.s32.totalorder %s87, %s89
    %p93 = scmp.eq.s32.totalorder %s11, 0
    %p94 = por %p92, %p93
    %p95 = scmp.ne.s32.totalorder %s87, %s89
    %p96 = scmp.eq.s32.totalorder %s16, 1
    %p97 = por %p95, %p96
    %p98 = scmp.ne.s32.totalorder %s89, %s90
    %p99 = scmp.eq.s32.totalorder %s16, 0
    %p100 = por %p98, %p99
    %p101 = scmp.ne.s32.totalorder %s89, %s90
    %p102 = scmp.eq.s32.totalorder %s17, 1
    %p103 = por %p101, %p102
    %p105 = scmp.ne.s32.totalorder %s90, %s104
    %p106 = scmp.eq.s32.totalorder %s17, 0
    %p107 = por %p105, %p106
    %s109 = sadd.s32 %s108, 1
    %p112 = scmp.eq.s32.totalorder %s11, 1
    %p113 = scmp.ne.s32.totalorder %s108, %s110
    %p114 = scmp.eq.s32.totalorder %s11, 0
    %p115 = por %p113, %p114
    %p116 = scmp.ne.s32.totalorder %s108, %s110
    %p117 = scmp.eq.s32.totalorder %s16, 1
    %p118 = por %p116, %p117
    %p119 = scmp.ne.s32.totalorder %s110, %s111
    %p120 = scmp.eq.s32.totalorder %s16, 0
    %p121 = por %p119, %p120
    %p122 = scmp.ne.s32.totalorder %s110, %s111
    %p123 = scmp.eq.s32.totalorder %s17, 1
    %p124 = por %p122, %p123
    %p126 = scmp.ne.s32.totalorder %s111, %s125
    %p127 = scmp.eq.s32.totalorder %s17, 0
    %p128 = por %p126, %p127
    %s129 = ssub.s32 %s11, %s18
    %p130 = scmp.eq.s32.totalorder %s129, 0
    %s132 = sadd.s32 %s131, 1
    %s133 = scalar_select %p130, %s131, %s132
    %p136 = pneg %p130
    %p137 = scmp.eq.s32.totalorder %s11, 1
    %p138 = por %p136, %p137
    %p139 = scmp.ne.s32.totalorder %s131, %s134
    %p140 = scmp.eq.s32.totalorder %s11, 0
    %p141 = por %p139, %p140
    %p142 = scmp.ne.s32.totalorder %s131, %s134
    %p143 = scmp.eq.s32.totalorder %s16, 1
    %p144 = por %p142, %p143
    %p145 = scmp.ne.s32.totalorder %s134, %s135
    %p146 = scmp.eq.s32.totalorder %s16, 0
    %p147 = por %p145, %p146
    %p148 = scmp.ne.s32.totalorder %s134, %s135
    %p149 = scmp.eq.s32.totalorder %s17, 1
    %p150 = por %p148, %p149
    %p152 = scmp.ne.s32.totalorder %s135, %s151
    %p153 = scmp.eq.s32.totalorder %s17, 0
    %p154 = por %p152, %p153
    %p155 = scmp.le.s32.totalorder 1, %s11
    %p156 = scmp.lt.s32.totalorder %s11, 3
    %p157 = pnand %p155, %p156
    %p158 = pneg %p157
    // Predicated region
    $region9: #{residual_forward.1} parent=5 // pred_check
      _
    $region10: #{residual_forward.1} parent=5 // pred_check_branch
      %160 = sbr.rel (%p157) target = $region12
    $region11: #{residual_forward.1} parent=5 // pred_region
      %s161 = ssub.s32 %s11, 1
      // Predicated region
      $region13: #{residual_forward.1} parent=11 // pred_check
        %p162 = pneg %p58
      $region14: #{residual_forward.1} parent=11 // pred_check_branch
        %164 = sbr.rel (%p162) target = $region16
      $region15: #{residual_forward.1} parent=11 // pred_region
        _
      $region16: #{residual_forward.1} parent=11 // pred_fallthru
        _
      // Predicated region
      $region17: #{residual_forward.1} parent=11 // pred_check
        %p165 = pneg %p79
      $region18: #{residual_forward.1} parent=11 // pred_check_branch
        %167 = sbr.rel (%p165) target = $region20
      $region19: #{residual_forward.1} parent=11 // pred_region
        _
      $region20: #{residual_forward.1} parent=11 // pred_fallthru
        _
      // Predicated region
      $region21: #{residual_forward.1} parent=11 // pred_check
        %p168 = pneg %p100
      $region22: #{residual_forward.1} parent=11 // pred_check_branch
        %170 = sbr.rel (%p168) target = $region24
      $region23: #{residual_forward.1} parent=11 // pred_region
        _
      $region24: #{residual_forward.1} parent=11 // pred_fallthru
        _
      // Predicated region
      $region25: #{residual_forward.1} parent=11 // pred_check
        %p171 = pneg %p121
      $region26: #{residual_forward.1} parent=11 // pred_check_branch
        %173 = sbr.rel (%p171) target = $region28
      $region27: #{residual_forward.1} parent=11 // pred_region
        _
      $region28: #{residual_forward.1} parent=11 // pred_fallthru
        _
    $region12: #{residual_forward.1} parent=5 // pred_fallthru
      _
    %p174 = scmp.lt.s32.totalorder %s11, 2
    // Predicated region
    $region29: #{residual_forward.1} parent=5 // pred_check
      %p175 = pneg %p174
    $region30: #{residual_forward.1} parent=5 // pred_check_branch
      %177 = sbr.rel (%p175) target = $region32
    $region31: #{residual_forward.1} parent=5 // pred_region
      // Predicated region
      $region33: #{residual_forward.1} parent=31 // pred_check
        %p178 = pneg %p31
      $region34: #{residual_forward.1} parent=31 // pred_check_branch
        %180 = sbr.rel (%p178) target = $region36
      $region35: #{residual_forward.1} parent=31 // pred_region
        %p181 = scmp.lt.s32.totalorder %s11, 1
        %s182 = scalar_select %p181, %s11, 1
        %s183 = smul.addr %s182, 8
        %s184 = scalar_lea.vmem %s0, %s183
      $region36: #{residual_forward.1} parent=31 // pred_fallthru
        _
    $region32: #{residual_forward.1} parent=5 // pred_fallthru
      _
    %p185 = scmp.le.s32.totalorder 1, %s11
    %p186 = scmp.lt.s32.totalorder %s11, 3
    %p187 = pnand %p185, %p186
    %p188 = pneg %p187
    // Predicated region
    $region37: #{residual_forward.1} parent=5 // pred_check
      _
    $region38: #{residual_forward.1} parent=5 // pred_check_branch
      %190 = sbr.rel (%p187) target = $region40
    $region39: #{residual_forward.1} parent=5 // pred_region
      %s191 = ssub.s32 %s11, 1
      %p192 = scmp.lt.s32.totalorder %s16, 1
      %s193 = scalar_select %p192, %s16, 1
      %s194 = smul.addr %s193, 8
      %s195 = scalar_lea.vmem %s0, %s194
      %p196 = pneg %p37
      %p197 = pneg %p34
      %p198 = pneg %p58
      %p199 = pneg %p55
      %p200 = pneg %p79
      %p201 = pneg %p76
      %p202 = pneg %p100
      %p203 = pneg %p97
      %p204 = pneg %p121
      %p205 = pneg %p118
      %p206 = pneg %p147
      %p207 = pneg %p144
      %p208 = scmp.lt.s32.totalorder %s16, 1
      %s209 = scalar_select %p208, %s16, 1
      %s210 = smul.addr %s209, 8
      %s211 = scalar_lea.vmem %s5, %s210
      %p212 = scmp.lt.s32.totalorder %s16, 1
      %s213 = scalar_select %p212, %s16, 1
      %s214 = smul.addr %s213, 8
      %s215 = scalar_lea.vmem %s0, %s214
      %p216 = scmp.lt.s32.totalorder %s16, 1
      %s217 = scalar_select %p216, %s16, 1
      %s218 = smul.addr %s217, 8
      %s219 = scalar_lea.vmem %s5, %s218
      %v220 = vld [vmem:[%s215] sm:$0xff]
      %v221 = vmax.f32 %v220, 0.0
      %v222 = vrot.slane %v221, 7
      %v223 = vrot.slane %v221, 1
      %v224 = vlaneseq
      %v225 = vshrl.u32 %v224, 7
      %vm226 = vcmp.lt.s32.totalorder %v225, 0
      %v227 = vsub.s32 0, %v225
      %v228 = vsel %vm226, %v227, %v225
      %v229 = vshrl.u32 %v228, 3
      %v230 = vand.u32 %v228, 7
      %v231 = vsub.s32 0, %v230
      %v232 = vsel %vm226, %v231, %v230
      %vm233 = vcmp.ne.s32.totalorder %v232, 0
      %vm234 = vcmp.lt.s32.totalorder %v232, 0
      %vm235 = vmand %vm234, %vm233
      %v236 = vadd.s32 %v232, 8
      %v237 = vsel %vm235, %v236, %v232
      %vm238 = vcmp.eq.s32.totalorder %v237, 0
      %v239 = vsel %vm238, 1, 0
      %vm240 = vcmp.eq.s32.totalorder %v239, 1
      %v241 = vsel %vm240, 0.0, %v222
      %vm242 = vcmp.eq.s32.totalorder %v237, 7
      %v243 = vsel %vm242, 1, 0
      %vm244 = vcmp.eq.s32.totalorder %v243, 1
      %v245 = vsel %vm244, 0.0, %v223
      %v246 = vpack.c.bf16 %v221, %v221
      %v247 = vld [vmem:[%s1] sm:$0xf]
      %v248 = vld [vmem:[%s1 + $0x4] sm:$0xf]
      %v249 = vld [vmem:[%s1 + $0x8] sm:$0xf]
      %v250 = vld [vmem:[%s1 + $0xc] sm:$0xf]
      %v251 = vld [vmem:[%s1 + $0x10] sm:$0xf]
      %v252 = vld [vmem:[%s1 + $0x14] sm:$0xf]
      %v253 = vld [vmem:[%s1 + $0x18] sm:$0xf]
      %v254 = vld [vmem:[%s1 + $0x1c] sm:$0xf]
      %v255 = vld [vmem:[%s1 + $0x20] sm:$0xf]
      %v256 = vld [vmem:[%s1 + $0x24] sm:$0xf]
      %v257 = vld [vmem:[%s1 + $0x28] sm:$0xf]
      %v258 = vld [vmem:[%s1 + $0x2c] sm:$0xf]
      %v259 = vld [vmem:[%s1 + $0x30] sm:$0xf]
      %v260 = vld [vmem:[%s1 + $0x34] sm:$0xf]
      %v261 = vld [vmem:[%s1 + $0x38] sm:$0xf]
      %v262 = vld [vmem:[%s1 + $0x3c] sm:$0xf]
      %v263 = vpack.c.bf16 %v241, %v241
      %v264 = vld [vmem:[%s2] sm:$0xf]
      %v265 = vld [vmem:[%s2 + $0x4] sm:$0xf]
      %v266 = vld [vmem:[%s2 + $0x8] sm:$0xf]
      %v267 = vld [vmem:[%s2 + $0xc] sm:$0xf]
      %v268 = vld [vmem:[%s2 + $0x10] sm:$0xf]
      %v269 = vld [vmem:[%s2 + $0x14] sm:$0xf]
      %v270 = vld [vmem:[%s2 + $0x18] sm:$0xf]
      %v271 = vld [vmem:[%s2 + $0x1c] sm:$0xf]
      %v272 = vld [vmem:[%s2 + $0x20] sm:$0xf]
      %v273 = vld [vmem:[%s2 + $0x24] sm:$0xf]
      %v274 = vld [vmem:[%s2 + $0x28] sm:$0xf]
      %v275 = vld [vmem:[%s2 + $0x2c] sm:$0xf]
      %v276 = vld [vmem:[%s2 + $0x30] sm:$0xf]
      %v277 = vld [vmem:[%s2 + $0x34] sm:$0xf]
      %v278 = vld [vmem:[%s2 + $0x38] sm:$0xf]
      %v279 = vld [vmem:[%s2 + $0x3c] sm:$0xf]
      %v296 = vunpack.c.l.b16 %v264
      %v297 = vunpack.c.l.b16 %v265
      %v298 = vunpack.c.l.b16 %v266
      %v299 = vunpack.c.l.b16 %v267
      %v300 = vunpack.c.l.b16 %v268
      %v301 = vunpack.c.l.b16 %v269
      %v302 = vunpack.c.l.b16 %v270
      %v303 = vunpack.c.l.b16 %v271
      %v304 = vunpack.c.l.b16 %v272
      %v305 = vunpack.c.l.b16 %v273
      %v306 = vunpack.c.l.b16 %v274
      %v307 = vunpack.c.l.b16 %v275
      %v308 = vunpack.c.l.b16 %v276
      %v309 = vunpack.c.l.b16 %v277
      %v310 = vunpack.c.l.b16 %v278
      %v311 = vunpack.c.l.b16 %v279
      %v312 = vpack.c.b16 %v297, %v296
      %v313 = vpack.c.b16 %v299, %v298
      %v314 = vpack.c.b16 %v301, %v300
      %v315 = vpack.c.b16 %v303, %v302
      %v316 = vpack.c.b16 %v305, %v304
      %v317 = vpack.c.b16 %v307, %v306
      %v318 = vpack.c.b16 %v309, %v308
      %v319 = vpack.c.b16 %v311, %v310
      %328 = vmatpush.bf16.msra.mxu0 %v319
      %329 = vmatpush.bf16.msra.mxu0 %v318
      %330 = vmatpush.bf16.msra.mxu0 %v317
      %331 = vmatpush.bf16.msra.mxu0 %v316
      %332 = vmatpush.bf16.msra.mxu0 %v315
      %333 = vmatpush.bf16.msra.mxu0 %v314
      %334 = vmatpush.bf16.msra.mxu0 %v313
      %335 = vmatpush.bf16.msra.mxu0 %v312
      %336 = vmatmul.bf16.gmra.mxu0 %v263
      %v337 = vpop.f32.mrf.mxu0
      %v338 = vadd.f32 0.0, %v337
      %v339 = vpop.f32.mrf.mxu0
      %340 = vdwg.mxu0
      %v357 = vunpack.c.l.b16 %v247
      %v358 = vunpack.c.l.b16 %v248
      %v359 = vunpack.c.l.b16 %v249
      %v360 = vunpack.c.l.b16 %v250
      %v361 = vunpack.c.l.b16 %v251
      %v362 = vunpack.c.l.b16 %v252
      %v363 = vunpack.c.l.b16 %v253
      %v364 = vunpack.c.l.b16 %v254
      %v365 = vunpack.c.l.b16 %v255
      %v366 = vunpack.c.l.b16 %v256
      %v367 = vunpack.c.l.b16 %v257
      %v368 = vunpack.c.l.b16 %v258
      %v369 = vunpack.c.l.b16 %v259
      %v370 = vunpack.c.l.b16 %v260
      %v371 = vunpack.c.l.b16 %v261
      %v372 = vunpack.c.l.b16 %v262
      %v373 = vpack.c.b16 %v358, %v357
      %v374 = vpack.c.b16 %v360, %v359
      %v375 = vpack.c.b16 %v362, %v361
      %v376 = vpack.c.b16 %v364, %v363
      %v377 = vpack.c.b16 %v366, %v365
      %v378 = vpack.c.b16 %v368, %v367
      %v379 = vpack.c.b16 %v370, %v369
      %v380 = vpack.c.b16 %v372, %v371
      %389 = vmatpush.bf16.msra.mxu0 %v380
      %390 = vmatpush.bf16.msra.mxu0 %v379
      %391 = vmatpush.bf16.msra.mxu0 %v378
      %392 = vmatpush.bf16.msra.mxu0 %v377
      %393 = vmatpush.bf16.msra.mxu0 %v376
      %394 = vmatpush.bf16.msra.mxu0 %v375
      %395 = vmatpush.bf16.msra.mxu0 %v374
      %396 = vmatpush.bf16.msra.mxu0 %v373
      %397 = vmatmul.bf16.gmra.mxu0 %v246
      %v398 = vpop.f32.mrf.mxu0
      %v399 = vadd.f32 %v338, %v398
      %v400 = vpop.f32.mrf.mxu0
      %401 = vdwg.mxu0
      %v402 = vpack.c.bf16 %v245, %v245
      %v403 = vld [vmem:[%s3] sm:$0xf]
      %v404 = vld [vmem:[%s3 + $0x4] sm:$0xf]
      %v405 = vld [vmem:[%s3 + $0x8] sm:$0xf]
      %v406 = vld [vmem:[%s3 + $0xc] sm:$0xf]
      %v407 = vld [vmem:[%s3 + $0x10] sm:$0xf]
      %v408 = vld [vmem:[%s3 + $0x14] sm:$0xf]
      %v409 = vld [vmem:[%s3 + $0x18] sm:$0xf]
      %v410 = vld [vmem:[%s3 + $0x1c] sm:$0xf]
      %v411 = vld [vmem:[%s3 + $0x20] sm:$0xf]
      %v412 = vld [vmem:[%s3 + $0x24] sm:$0xf]
      %v413 = vld [vmem:[%s3 + $0x28] sm:$0xf]
      %v414 = vld [vmem:[%s3 + $0x2c] sm:$0xf]
      %v415 = vld [vmem:[%s3 + $0x30] sm:$0xf]
      %v416 = vld [vmem:[%s3 + $0x34] sm:$0xf]
      %v417 = vld [vmem:[%s3 + $0x38] sm:$0xf]
      %v418 = vld [vmem:[%s3 + $0x3c] sm:$0xf]
      %v435 = vunpack.c.l.b16 %v403
      %v436 = vunpack.c.l.b16 %v404
      %v437 = vunpack.c.l.b16 %v405
      %v438 = vunpack.c.l.b16 %v406
      %v439 = vunpack.c.l.b16 %v407
      %v440 = vunpack.c.l.b16 %v408
      %v441 = vunpack.c.l.b16 %v409
      %v442 = vunpack.c.l.b16 %v410
      %v443 = vunpack.c.l.b16 %v411
      %v444 = vunpack.c.l.b16 %v412
      %v445 = vunpack.c.l.b16 %v413
      %v446 = vunpack.c.l.b16 %v414
      %v447 = vunpack.c.l.b16 %v415
      %v448 = vunpack.c.l.b16 %v416
      %v449 = vunpack.c.l.b16 %v417
      %v450 = vunpack.c.l.b16 %v418
      %v451 = vpack.c.b16 %v436, %v435
      %v452 = vpack.c.b16 %v438, %v437
      %v453 = vpack.c.b16 %v440, %v439
      %v454 = vpack.c.b16 %v442, %v441
      %v455 = vpack.c.b16 %v444, %v443
      %v456 = vpack.c.b16 %v446, %v445
      %v457 = vpack.c.b16 %v448, %v447
      %v458 = vpack.c.b16 %v450, %v449
      %467 = vmatpush.bf16.msra.mxu0 %v458
      %468 = vmatpush.bf16.msra.mxu0 %v457
      %469 = vmatpush.bf16.msra.mxu0 %v456
      %470 = vmatpush.bf16.msra.mxu0 %v455
      %471 = vmatpush.bf16.msra.mxu0 %v454
      %472 = vmatpush.bf16.msra.mxu0 %v453
      %473 = vmatpush.bf16.msra.mxu0 %v452
      %474 = vmatpush.bf16.msra.mxu0 %v451
      %475 = vmatmul.bf16.gmra.mxu0 %v402
      %v476 = vpop.f32.mrf.mxu0
      %v477 = vadd.f32 0.0, %v476
      %v478 = vpop.f32.mrf.mxu0
      %479 = vdwg.mxu0
      %v480 = vadd.f32 %v399, %v477
      %v481 = vmax.f32 %v480, 0.0
      %v482 = vpack.c.bf16 %v481, %v481
      %v483 = vld [vmem:[%s4] sm:$0xf]
      %v484 = vld [vmem:[%s4 + $0x4] sm:$0xf]
      %v485 = vld [vmem:[%s4 + $0x8] sm:$0xf]
      %v486 = vld [vmem:[%s4 + $0xc] sm:$0xf]
      %v487 = vld [vmem:[%s4 + $0x10] sm:$0xf]
      %v488 = vld [vmem:[%s4 + $0x14] sm:$0xf]
      %v489 = vld [vmem:[%s4 + $0x18] sm:$0xf]
      %v490 = vld [vmem:[%s4 + $0x1c] sm:$0xf]
      %v491 = vld [vmem:[%s4 + $0x20] sm:$0xf]
      %v492 = vld [vmem:[%s4 + $0x24] sm:$0xf]
      %v493 = vld [vmem:[%s4 + $0x28] sm:$0xf]
      %v494 = vld [vmem:[%s4 + $0x2c] sm:$0xf]
      %v495 = vld [vmem:[%s4 + $0x30] sm:$0xf]
      %v496 = vld [vmem:[%s4 + $0x34] sm:$0xf]
      %v497 = vld [vmem:[%s4 + $0x38] sm:$0xf]
      %v498 = vld [vmem:[%s4 + $0x3c] sm:$0xf]
      %v515 = vunpack.c.l.b16 %v483
      %v516 = vunpack.c.l.b16 %v484
      %v517 = vunpack.c.l.b16 %v485
      %v518 = vunpack.c.l.b16 %v486
      %v519 = vunpack.c.l.b16 %v487
      %v520 = vunpack.c.l.b16 %v488
      %v521 = vunpack.c.l.b16 %v489
      %v522 = vunpack.c.l.b16 %v490
      %v523 = vunpack.c.l.b16 %v491
      %v524 = vunpack.c.l.b16 %v492
      %v525 = vunpack.c.l.b16 %v493
      %v526 = vunpack.c.l.b16 %v494
      %v527 = vunpack.c.l.b16 %v495
      %v528 = vunpack.c.l.b16 %v496
      %v529 = vunpack.c.l.b16 %v497
      %v530 = vunpack.c.l.b16 %v498
      %v531 = vpack.c.b16 %v516, %v515
      %v532 = vpack.c.b16 %v518, %v517
      %v533 = vpack.c.b16 %v520, %v519
      %v534 = vpack.c.b16 %v522, %v521
      %v535 = vpack.c.b16 %v524, %v523
      %v536 = vpack.c.b16 %v526, %v525
      %v537 = vpack.c.b16 %v528, %v527
      %v538 = vpack.c.b16 %v530, %v529
      %547 = vmatpush.bf16.msra.mxu0 %v538
      %548 = vmatpush.bf16.msra.mxu0 %v537
      %549 = vmatpush.bf16.msra.mxu0 %v536
      %550 = vmatpush.bf16.msra.mxu0 %v535
      %551 = vmatpush.bf16.msra.mxu0 %v534
      %552 = vmatpush.bf16.msra.mxu0 %v533
      %553 = vmatpush.bf16.msra.mxu0 %v532
      %554 = vmatpush.bf16.msra.mxu0 %v531
      %555 = vmatmul.bf16.gmra.mxu0 %v482
      %v556 = vpop.f32.mrf.mxu0
      %v557 = vadd.f32 0.0, %v556
      %v558 = vpop.f32.mrf.mxu0
      %559 = vdwg.mxu0
      %v560 = vadd.f32 %v220, %v557
      %561 = vst [vmem:[%s219] sm:$0xff] %v560
      %p562 = scmp.lt.s32.totalorder %s16, 1
      %s563 = scalar_select %p562, %s16, 1
      %s564 = smul.addr %s563, 8
      %s565 = scalar_lea.vmem %s5, %s564
      // Predicated region
      $region41: #{residual_forward.1} parent=39 // pred_check
        %p566 = pneg %p144
      $region42: #{residual_forward.1} parent=39 // pred_check_branch
        %568 = sbr.rel (%p566) target = $region44
      $region43: #{residual_forward.1} parent=39 // pred_region
        _
      $region44: #{residual_forward.1} parent=39 // pred_fallthru
        _
    $region40: #{residual_forward.1} parent=5 // pred_fallthru
      _
    %p569 = scmp.le.s32.totalorder 2, %s11
    // Predicated region
    $region45: #{residual_forward.1} parent=5 // pred_check
      %p570 = pneg %p569
    $region46: #{residual_forward.1} parent=5 // pred_check_branch
      %572 = sbr.rel (%p570) target = $region48
    $region47: #{residual_forward.1} parent=5 // pred_region
      %s573 = ssub.s32 %s11, 2
      // Predicated region
      $region49: #{residual_forward.1} parent=47 // pred_check
        %p574 = pneg %p150
      $region50: #{residual_forward.1} parent=47 // pred_check_branch
        %576 = sbr.rel (%p574) target = $region52
      $region51: #{residual_forward.1} parent=47 // pred_region
        %p577 = scmp.lt.s32.totalorder %s17, 1
        %s578 = scalar_select %p577, %s17, 1
        %s579 = smul.addr %s578, 8
        %s580 = scalar_lea.vmem %s5, %s579
      $region52: #{residual_forward.1} parent=47 // pred_fallthru
        _
    $region48: #{residual_forward.1} parent=5 // pred_fallthru
      _
  $region6: #{residual_forward.1} parent=0 // loop_footer
    %s15 = sadd.s32 1, %s11
  $region7: #{residual_forward.1} parent=0 // loop_footer_branch
    %10 = sbr.rel target = $region3
  $region8: #{residual_forward.1} parent=0 // loop_exit
    _

</llo_original>
